<compile_context>
chip_gen: v7x
topology: tpu7x:2x2x1
jax: 0.10.0
libtpu: 0.0.40
codegen_flags: <defaults>
</compile_context>

<pallas_src>
import jax
import jax.numpy as jnp
from jax import lax
from jax.experimental import pallas as pl
from jax.experimental.pallas import tpu as pltpu


def _round_up(x, m):
    return (x + m - 1) // m * m


# -----------------------------------------------------------------------------
# Phase 1: masked-sum pooling over the point axis (HBM-bound streaming matmul).
# -----------------------------------------------------------------------------
def _pool_kernel(mask_ref, feats_ref, sum_ref, cnt_ref):
    """grid = (S ["parallel"], M tiles ["parallel"], Np tiles ["arbitrary"])

    mask_ref : (TM, TNp)    bf16  0/1 membership tile (0/1 exact in bf16)
    feats_ref: (TNp, D_pad) bf16  point-feature tile
    sum_ref  : (TM, D_pad)  f32   output block, revisited across the Np axis
    cnt_ref  : (TM, 128)    f32   per-row point counts (all lanes identical)
    """
    k = pl.program_id(2)

    @pl.when(k == 0)
    def _init():
        sum_ref[...] = jnp.zeros_like(sum_ref)
        cnt_ref[...] = jnp.zeros_like(cnt_ref)

    m = mask_ref[...]
    # scatter_mean / masked-mean numerator: bf16 MXU matmul, f32 accumulation.
    sum_ref[...] += jnp.dot(m, feats_ref[...],
                            preferred_element_type=jnp.float32)
    # Point counts in f32 (exact up to 2^24 points per caption row); the XLU
    # row-sum hides under the MXU / DMA stream.
    cnt_ref[...] += jnp.sum(m.astype(jnp.float32), axis=-1, keepdims=True)


# -----------------------------------------------------------------------------
# Phase 2: tiny epilogue -- mean, L2-normalize, scaled cosine logits.
# -----------------------------------------------------------------------------
def _logits_kernel(scale_ref, sum_ref, cnt_ref, embed_ref, out_ref):
    """grid = (M tiles,)

    scale_ref: (1,)            f32 SMEM  exp(caption_logit_scale)
    sum_ref  : (S, TM, D_pad)  f32       partial pooled sums
    cnt_ref  : (S, TM, 128)    f32       partial point counts
    embed_ref: (C_pad, D_pad)  bf16      pre-normalized caption embeddings
    out_ref  : (TM, C_pad)     f32       caption logits tile (lane-dense)
    """
    sums = jnp.sum(sum_ref[...], axis=0)                 # (TM, D_pad)
    counts = jnp.sum(cnt_ref[...], axis=0)[:, :1]        # (TM, 1)

    # Mean pool; EUP approx reciprocal -- any per-row scale error cancels in
    # the L2 normalization below.  Empty / padded rows -> pooled 0 -> logits 0.
    pooled = sums * pl.reciprocal(jnp.maximum(counts, 1.0), approx=True)

    # F.normalize(x, dim=-1, eps=1e-12) == x * rsqrt(max(sum(x^2), eps^2))
    ssq = jnp.sum(pooled * pooled, axis=-1, keepdims=True)
    p = (pooled * lax.rsqrt(jnp.maximum(ssq, 1e-24))).astype(jnp.bfloat16)

    # NT matmul (contract on D), bf16 x bf16 -> f32 accumulation, no
    # materialized transpose; exp(logit_scale) applied to the f32 output.
    logits = lax.dot_general(p, embed_ref[...], (((1,), (1,)), ((), ())),
                             preferred_element_type=jnp.float32)
    out_ref[...] = logits * scale_ref[0]


# -----------------------------------------------------------------------------
# Tiling / VMEM budgeting (generation-aware: 128 MiB v5e/v6e, 64 MiB v7x).
# -----------------------------------------------------------------------------
def _pick_tiles(m_total, n_points, d_pad):
    try:
        vmem_cap = int(pltpu.get_tpu_info().vmem_capacity_bytes)
    except Exception:  # conservative fallback (v7x) if the query is unavailable
        vmem_cap = 64 * 1024 * 1024

    # M tiling: one tile whenever it fits so feats is streamed from HBM exactly
    # once; otherwise MXU-native 256 rows (v6e/v7x 2x256x256 array).
    m_total = max(m_total, 1)
    tm = _round_up(m_total, 8) if m_total <= 512 else 256
    m_pad = _round_up(m_total, tm)
    m_tiles = m_pad // tm

    # Np tiling: solve TNp against a VMEM budget that also accounts for the
    # resident (double-buffered) output accumulator blocks.
    np128 = _round_up(max(n_points, 1), 128)
    budget = vmem_cap // 2
    fixed = 2 * tm * d_pad * 4 + 2 * tm * 128 * 4          # sums + counts blocks
    per_np = 2 * 2 * tm + 2 * 2 * d_pad                    # dbl-buffered bf16 streams
    avail = max(budget - fixed, 128 * per_np)
    tnp_max = max(128, min((avail // per_np) // 128 * 128, 8192))

    # Split the Np reduction in two when the M axis collapsed to a single tile:
    # on v7x both TensorCores stream disjoint point halves (~2x HBM BW); on
    # single-TC chips the extra "parallel" axis is just a cheap loop.
    s_split = 2 if (m_tiles == 1 and np128 >= 256) else 1
    np_tiles = _round_up(max(pl.cdiv(np128, min(tnp_max, np128)), s_split), s_split)
    tnp = _round_up(pl.cdiv(np128, np_tiles), 128)
    np_pad = tnp * np_tiles

    return tm, m_pad, tnp, np_pad, s_split, vmem_cap


# -----------------------------------------------------------------------------
# Fused logits for all caption types in one pooling pass + tiny epilogue.
# -----------------------------------------------------------------------------
def caption_logits_fused(point_feats, masks, embeds, caption_logit_scale):
    """point_feats : (Np, D)             adapter_feats[v2p_map] (any float dtype)
    masks        : list of (M_t, Np)    0/1 pooling masks per caption type
    embeds       : list of (C_t, D)     caption text embeddings per type
    returns      : ((sum M_t, sum C_t) f32 logits, (sum M_t,) int32 counts)
    """
    n_points, d = point_feats.shape
    m_sizes = [int(m.shape[0]) for m in masks]
    c_sizes = [int(e.shape[0]) for e in embeds]
    m_total, c_total = sum(m_sizes), sum(c_sizes)

    d_pad = _round_up(d, 128)                  # no fused ones-column
    c_pad = _round_up(max(c_total, 1), 128)    # lane-dense output stores
    tm, m_pad, tnp, np_pad, s_split, vmem_cap = _pick_tiles(m_total, n_points, d_pad)
    m_tiles = m_pad // tm
    np_tiles = np_pad // tnp
    npc = np_tiles // s_split                  # Np tiles handled per split

    # mask: (M_pad, Np_pad) bf16, zero padded (0/1 is exact in bf16).
    mask = jnp.concatenate([m.astype(jnp.bfloat16) for m in masks], axis=0)
    mask = jnp.pad(mask, ((0, m_pad - m_total), (0, np_pad - n_points)))

    # feats: single fused cast + pad of the dominant operand (no rebuild with
    # zeros().at[].set()).
    feats = jnp.pad(point_feats.astype(jnp.bfloat16),
                    ((0, np_pad - n_points), (0, d_pad - d)))

    # embeds: pre-normalized on the host (f32 rsqrt), then bf16; padded rows 0.
    embed = jnp.concatenate([e.astype(jnp.float32) for e in embeds], axis=0)
    embed = embed * lax.rsqrt(
        jnp.maximum(jnp.sum(embed * embed, axis=-1, keepdims=True), 1e-24))
    embed = jnp.pad(embed, ((0, c_pad - c_total), (0, d_pad - d))).astype(jnp.bfloat16)

    scale = jnp.exp(jnp.asarray(caption_logit_scale, jnp.float32)).reshape(1)

    # ------------------- Phase 1: streaming masked-sum pooling ---------------
    p1_vmem = (2 * tm * tnp * 2 + 2 * tnp * d_pad * 2    # dbl-buffered bf16 streams
               + 2 * tm * d_pad * 4 + 2 * tm * 128 * 4)  # resident output blocks
    p1_limit = int(min(max(p1_vmem * 3 // 2, 32 * 1024 * 1024), vmem_cap * 3 // 4))

    sums, counts = pl.pallas_call(
        _pool_kernel,
        out_shape=(jax.ShapeDtypeStruct((s_split, m_pad, d_pad), jnp.float32),
                   jax.ShapeDtypeStruct((s_split, m_pad, 128), jnp.float32)),
        grid=(s_split, m_tiles, npc),
        in_specs=[
            pl.BlockSpec((tm, tnp), lambda s, i, k: (i, s * npc + k)),
            pl.BlockSpec((tnp, d_pad), lambda s, i, k: (s * npc + k, 0)),
        ],
        out_specs=(
            pl.BlockSpec((None, tm, d_pad), lambda s, i, k: (s, i, 0)),
            pl.BlockSpec((None, tm, 128), lambda s, i, k: (s, i, 0)),
        ),
        compiler_params=pltpu.CompilerParams(
            dimension_semantics=("parallel", "parallel", "arbitrary"),
            vmem_limit_bytes=p1_limit),
    )(mask, feats)

    # ------------- Phase 2: mean + normalize + scaled cosine logits ----------
    p2_vmem = (2 * s_split * tm * d_pad * 4 + 2 * s_split * tm * 128 * 4
               + 2 * c_pad * d_pad * 2 + 2 * tm * c_pad * 4)
    p2_limit = int(min(max(p2_vmem * 3 // 2, 32 * 1024 * 1024), vmem_cap * 3 // 4))

    logits = pl.pallas_call(
        _logits_kernel,
        out_shape=jax.ShapeDtypeStruct((m_pad, c_pad), jnp.float32),
        grid=(m_tiles,),
        in_specs=[
            pl.BlockSpec(memory_space=pltpu.MemorySpace.SMEM),         # scale
            pl.BlockSpec((s_split, tm, d_pad), lambda i: (0, i, 0)),   # sums
            pl.BlockSpec((s_split, tm, 128), lambda i: (0, i, 0)),     # counts
            pl.BlockSpec((c_pad, d_pad), lambda i: (0, 0)),            # embeds
        ],
        out_specs=pl.BlockSpec((tm, c_pad), lambda i: (i, 0)),
        compiler_params=pltpu.CompilerParams(
            dimension_semantics=("parallel",),
            vmem_limit_bytes=p2_limit),
    )(scale, sums, counts, embed)

    n_pts = jnp.sum(counts, axis=0)[:m_total, 0].astype(jnp.int32)
    return logits[:m_total, :c_total], n_pts


# -----------------------------------------------------------------------------
# CaptionHead.forward (training branch, FEAT_NORM=True, LOSS_FUNC='CrossEntropy')
# -----------------------------------------------------------------------------
def caption_head_forward(batch_dict, caption_logit_scale):
    """Returns forward_ret_dict.  Mask construction from the variable-length
    select_image_corr lists / batch_idxs and the exist_caption_idx filtering is
    host-side glue (it is a python loop in the PyTorch code as well)."""
    # Fold the bf16 cast into the v2p_map gather (gather+cast+pad fuse in XLA).
    point_feats = batch_dict["adapter_feats"].astype(jnp.bfloat16)[batch_dict["v2p_map"]]

    types, masks, embeds = [], [], []
    ret = {}
    for ctype, info in batch_dict["caption_infos"].items():
        if info["caption_embed"].shape[0] == 0 or info["pool_mask"].shape[0] == 0:
            # TODO(synk): zero_loss placeholder (adapter_feats.sum() * 0) is
            # loss bookkeeping for get_loss(), out of scope for the logits kernel.
            ret[ctype] = {"caption_labels": info["caption_idx"]}
            continue
        types.append(ctype)
        masks.append(info["pool_mask"])
        embeds.append(info["caption_embed"])

    if types:
        # TODO(synk): caption_scene could use a segment-sum over contiguous
        # batch segments (PrefetchScalarGridSpec) instead of a dense mask row.
        logits_full, n_points_full = caption_logits_fused(
            point_feats, masks, embeds, caption_logit_scale)
        m_off = c_off = 0
        for ctype, mk, em in zip(types, masks, embeds):
            m_t, c_t = mk.shape[0], em.shape[0]
            ret[ctype] = {
                "caption_output": logits_full[m_off:m_off + m_t,
                                              c_off:c_off + c_t],
                "caption_labels": batch_dict["caption_infos"][ctype]["caption_idx"],
            }
            if ctype != "caption_scene":
                ret[ctype]["caption_n_points"] = n_points_full[m_off:m_off + m_t]
            m_off += m_t
            c_off += c_t
    # TODO(synk): CrossEntropyLoss / BYOL in get_loss() is out of scope here.
    return ret


def _reference_logits(point_feats, mask, embed, caption_logit_scale):
    """Pure-JAX mirror of the PyTorch math (f32 throughout) for checking."""
    feats = point_feats.astype(jnp.float32)
    mask = mask.astype(jnp.float32)
    embed = embed.astype(jnp.float32)
    counts = jnp.maximum(mask.sum(-1, keepdims=True), 1.0)
    pooled = (mask @ feats) / counts
    p = pooled / jnp.maximum(
        jnp.linalg.norm(pooled, axis=-1, keepdims=True), 1e-12)
    e = embed / jnp.maximum(
        jnp.linalg.norm(embed, axis=-1, keepdims=True), 1e-12)
    return (p @ e.T) * jnp.exp(caption_logit_scale)


if __name__ == "__main__":
    key = jax.random.PRNGKey(0)
    Nv, Np, D, B = 200, 256, 32, 2
    k1, k2, k3, k4 = jax.random.split(key, 4)

    # deterministic synthetic inputs
    adapter_feats = jax.random.normal(k1, (Nv, D), jnp.float32)
    v2p_map = jax.random.randint(k2, (Np,), 0, Nv)
    batch_idxs = jnp.concatenate([jnp.zeros(Np // 2, jnp.int32),
                                  jnp.ones(Np - Np // 2, jnp.int32)])

    # learnable logit scale, initialized to log(1/0.07) as in __init__
    caption_logit_scale = jnp.asarray(jnp.log(1.0 / 0.07), jnp.float32)

    # ---- caption_scene: scatter_mean over batch index -> one mask row / scene
    scene_embed = jax.random.normal(k3, (B, D), jnp.float32)
    scene_mask = (batch_idxs[None, :] == jnp.arange(B)[:, None]).astype(jnp.float32)
    scene_idx = jnp.arange(B, dtype=jnp.int32)

    # ---- caption_view: per-image point subsets -> one mask row per (scene, image)
    view_embed = jax.random.normal(k4, (6, D), jnp.float32)
    view_point_sets = [jnp.arange(0, 40), jnp.arange(50, 90),
                       jnp.arange(130, 170), jnp.arange(200, 240)]
    view_mask = jnp.zeros((len(view_point_sets), Np), jnp.float32)
    for i, idx in enumerate(view_point_sets):
        view_mask = view_mask.at[i, idx].set(1.0)
    view_idx = jnp.asarray([1, 3, 0, 5], jnp.int32)   # caption_idx[exist_caption_idx]

    batch_dict = {
        "adapter_feats": adapter_feats,
        "v2p_map": v2p_map,
        "batch_idxs": batch_idxs,
        "caption_infos": {
            "caption_scene": {"caption_embed": scene_embed,
                              "caption_idx": scene_idx,
                              "pool_mask": scene_mask},
            "caption_view": {"caption_embed": view_embed,
                             "caption_idx": view_idx,
                             "pool_mask": view_mask},
        },
    }

    out = caption_head_forward(batch_dict, caption_logit_scale)
    jax.block_until_ready(out)

    assert out["caption_scene"]["caption_output"].shape == (B, B)
    assert out["caption_view"]["caption_output"].shape == (4, 6)

    # per-caption point counts computed by the kernel (exact)
    expected_counts = jnp.asarray([len(s) for s in view_point_sets], jnp.int32)
    assert jnp.array_equal(out["caption_view"]["caption_n_points"], expected_counts)

    # numerical check vs. the pure-JAX f32 reference (bf16 streaming operands
    # with f32 accumulation -> small tolerance; see force_fp32 note above)
    point_feats = adapter_feats[v2p_map]
    ref_scene = _reference_logits(point_feats, scene_mask, scene_embed,
                                  caption_logit_scale)
    ref_view = _reference_logits(point_feats, view_mask, view_embed,
                                 caption_logit_scale)
    assert jnp.allclose(out["caption_scene"]["caption_output"], ref_scene,
                        atol=0.15, rtol=0.05)
    assert jnp.allclose(out["caption_view"]["caption_output"], ref_view,
                        atol=0.15, rtol=0.05)

    print("KERNEL_OK")
</pallas_src>

<mosaic_0001>
module attributes {stable_mosaic.version = 11 : i64} {
  func.func @_pool_kernel(%arg0: i32, %arg1: i32, %arg2: i32, %arg3: memref<8x128xbf16, #tpu.memory_space<vmem>>, %arg4: memref<128x128xbf16, #tpu.memory_space<vmem>>, %arg5: memref<1x8x128xf32, #tpu.memory_space<vmem>>, %arg6: memref<1x8x128xf32, #tpu.memory_space<vmem>>) attributes {dimension_semantics = [#tpu.dimension_semantics<parallel>, #tpu.dimension_semantics<parallel>, #tpu.dimension_semantics<arbitrary>], iteration_bounds = array<i64: 2, 1, 1>, scalar_prefetch = 0 : i64, scratch_operands = 0 : i64, tpu.core_type = #tpu.core_type<tc>, window_params = [{transform_indices = @transform_0, window_bounds = array<i64: 8, 128>}, {transform_indices = @transform_1, window_bounds = array<i64: 128, 128>}, {transform_indices = @transform_2, window_bounds = array<i64: 1, 8, 128>}, {transform_indices = @transform_3, window_bounds = array<i64: 1, 8, 128>}]} {
    %c0_i32 = arith.constant 0 : i32
    %0 = arith.cmpi eq, %arg2, %c0_i32 : i32
    %1 = arith.extui %0 : i1 to i32
    %c0_i32_0 = arith.constant 0 : i32
    %2 = arith.cmpi ne, %1, %c0_i32_0 : i32
    scf.if %2 {
      %cst_17 = arith.constant 0.000000e+00 : f32
      %22 = vector.broadcast %cst_17 : f32 to vector<8x128xf32>
      %c0_18 = arith.constant 0 : index
      %c0_19 = arith.constant 0 : index
      %c0_20 = arith.constant 0 : index
      %23 = vector.load %arg5[%c0_18, %c0_19, %c0_20] : memref<1x8x128xf32, #tpu.memory_space<vmem>>, vector<1x8x128xf32>
      %24 = vector.shape_cast %23 : vector<1x8x128xf32> to vector<8x128xf32>
      %25 = vector.shape_cast %22 : vector<8x128xf32> to vector<1x8x128xf32>
      tpu.vector_store %arg5[%c0_18, %c0_19, %c0_20], %25 {strides = array<i32>} : memref<1x8x128xf32, #tpu.memory_space<vmem>>, vector<1x8x128xf32>,
      %cst_21 = arith.constant 0.000000e+00 : f32
      %26 = vector.broadcast %cst_21 : f32 to vector<8x128xf32>
      %c0_22 = arith.constant 0 : index
      %c0_23 = arith.constant 0 : index
      %c0_24 = arith.constant 0 : index
      %27 = vector.load %arg6[%c0_22, %c0_23, %c0_24] : memref<1x8x128xf32, #tpu.memory_space<vmem>>, vector<1x8x128xf32>
      %28 = vector.shape_cast %27 : vector<1x8x128xf32> to vector<8x128xf32>
      %29 = vector.shape_cast %26 : vector<8x128xf32> to vector<1x8x128xf32>
      tpu.vector_store %arg6[%c0_22, %c0_23, %c0_24], %29 {strides = array<i32>} : memref<1x8x128xf32, #tpu.memory_space<vmem>>, vector<1x8x128xf32>,
    } else {
    }
    %c0 = arith.constant 0 : index
    %c0_1 = arith.constant 0 : index
    %3 = vector.load %arg3[%c0, %c0_1] : memref<8x128xbf16, #tpu.memory_space<vmem>>, vector<8x128xbf16>
    %c0_2 = arith.constant 0 : index
    %c0_3 = arith.constant 0 : index
    %c0_4 = arith.constant 0 : index
    %4 = vector.load %arg5[%c0_2, %c0_3, %c0_4] : memref<1x8x128xf32, #tpu.memory_space<vmem>>, vector<1x8x128xf32>
    %5 = vector.shape_cast %4 : vector<1x8x128xf32> to vector<8x128xf32>
    %c0_5 = arith.constant 0 : index
    %c0_6 = arith.constant 0 : index
    %6 = vector.load %arg4[%c0_5, %c0_6] : memref<128x128xbf16, #tpu.memory_space<vmem>>, vector<128x128xbf16>
    %cst = arith.constant dense<0.000000e+00> : vector<8x128xf32>
    %7 = tpu.matmul %3, %6, %cst {dimension_numbers = #tpu.dot_dimension_numbers<[1], [0], [0], [1], [0, 0, 1, 1], [], []>} : vector<8x128xbf16>, vector<128x128xbf16>, vector<8x128xf32> -> vector<8x128xf32>
    %8 = arith.addf %5, %7 : vector<8x128xf32>
    %c0_7 = arith.constant 0 : index
    %c0_8 = arith.constant 0 : index
    %c0_9 = arith.constant 0 : index
    %9 = vector.load %arg5[%c0_7, %c0_8, %c0_9] : memref<1x8x128xf32, #tpu.memory_space<vmem>>, vector<1x8x128xf32>
    %10 = vector.shape_cast %9 : vector<1x8x128xf32> to vector<8x128xf32>
    %11 = vector.shape_cast %8 : vector<8x128xf32> to vector<1x8x128xf32>
    tpu.vector_store %arg5[%c0_7, %c0_8, %c0_9], %11 {strides = array<i32>} : memref<1x8x128xf32, #tpu.memory_space<vmem>>, vector<1x8x128xf32>,
    %c0_10 = arith.constant 0 : index
    %c0_11 = arith.constant 0 : index
    %c0_12 = arith.constant 0 : index
    %12 = vector.load %arg6[%c0_10, %c0_11, %c0_12] : memref<1x8x128xf32, #tpu.memory_space<vmem>>, vector<1x8x128xf32>
    %13 = vector.shape_cast %12 : vector<1x8x128xf32> to vector<8x128xf32>
    %14 = arith.extf %3 : vector<8x128xbf16> to vector<8x128xf32>
    %cst_13 = arith.constant dense<0.000000e+00> : vector<8xf32>
    %15 = vector.multi_reduction <add>, %14, %cst_13 [1] : vector<8x128xf32> to vector<8xf32>
    %16 = vector.shape_cast %15 : vector<8xf32> to vector<8x1xf32>
    %17 = vector.broadcast %16 : vector<8x1xf32> to vector<8x128xf32>
    %18 = arith.addf %13, %17 : vector<8x128xf32>
    %c0_14 = arith.constant 0 : index
    %c0_15 = arith.constant 0 : index
    %c0_16 = arith.constant 0 : index
    %19 = vector.load %arg6[%c0_14, %c0_15, %c0_16] : memref<1x8x128xf32, #tpu.memory_space<vmem>>, vector<1x8x128xf32>
    %20 = vector.shape_cast %19 : vector<1x8x128xf32> to vector<8x128xf32>
    %21 = vector.shape_cast %18 : vector<8x128xf32> to vector<1x8x128xf32>
    tpu.vector_store %arg6[%c0_14, %c0_15, %c0_16], %21 {strides = array<i32>} : memref<1x8x128xf32, #tpu.memory_space<vmem>>, vector<1x8x128xf32>,
    return
  }
  func.func @transform_0(%arg0: i32, %arg1: i32, %arg2: i32) -> (i32, i32) {
    %c1_i32 = arith.constant 1 : i32
    %0 = arith.muli %arg0, %c1_i32 : i32
    %1 = arith.addi %0, %arg2 : i32
    %c0_i32 = arith.constant 0 : i32
    return %arg1, %1 : i32, i32
  }
  func.func @transform_1(%arg0: i32, %arg1: i32, %arg2: i32) -> (i32, i32) {
    %c1_i32 = arith.constant 1 : i32
    %0 = arith.muli %arg0, %c1_i32 : i32
    %1 = arith.addi %0, %arg2 : i32
    %c0_i32 = arith.constant 0 : i32
    %c0_i32_0 = arith.constant 0 : i32
    return %1, %c0_i32 : i32, i32
  }
  func.func @transform_2(%arg0: i32, %arg1: i32, %arg2: i32) -> (i32, i32, i32) {
    %c0_i32 = arith.constant 0 : i32
    %c0_i32_0 = arith.constant 0 : i32
    return %arg0, %arg1, %c0_i32 : i32, i32, i32
  }
  func.func @transform_3(%arg0: i32, %arg1: i32, %arg2: i32) -> (i32, i32, i32) {
    %c0_i32 = arith.constant 0 : i32
    %c0_i32_0 = arith.constant 0 : i32
    return %arg0, %arg1, %c0_i32 : i32, i32, i32
  }
}

</mosaic_0001>

<llo_original>
// kernel: tpu_custom_call.1
$region0: #{tpu_custom_call.1}
  #allocation0 [shape = 'u32[]', space=smem, size = 0x4, offset = 0x4, fixed_abs, tag = 'smem constant byte address 0x4 - core index']
  #allocation1 [shape = 'u32[144,128]{1,0:T(1,128)}', space=vmem, size = 0x12000, scoped, tag = 'internal scratch']
  %s0 = inlined_call_operand.hbm [shape: bf16[8,256], index: 0, kind: input, shape index: {}]
  %s1 = inlined_call_operand.hbm [shape: bf16[256,128], index: 1, kind: input, shape index: {}]
  %s2 = inlined_call_operand.hbm [shape: f32[2,8,128], index: 2, kind: output, shape index: {0}]
  %s3 = inlined_call_operand.hbm [shape: f32[2,8,128], index: 3, kind: output, shape index: {1}]
  %4 = xla_tuple %s2, %s3
  %s5 = sld [smem:[#allocation0]]
  $region61: #{tpu_custom_call.1} parent=0
    _
  %s7 = ssub.s32 1, %s5
  %s8 = scalar_select 0, %s7, %s5
  $region1: #{tpu_custom_call.1} parent=0
    #allocation2 [shape = 'u8[4096]{0}', space=vmem, size = 0x1000, scoped, tag = 'input window, operand 0']
    #allocation3 [shape = 's32[2]{0}', space=sflag, size = 0x8, scoped, tag = 'scoped memory for tpu_custom_call.1']
    #allocation4 [shape = 's32[2]{0}', space=sflag, size = 0x8, scoped, tag = 'scoped memory for tpu_custom_call.1']
    #allocation5 [shape = 'u8[65536]{0}', space=vmem, size = 0x10000, scoped, tag = 'input window, operand 1']
    #allocation6 [shape = 's32[2]{0}', space=sflag, size = 0x8, scoped, tag = 'scoped memory for tpu_custom_call.1']
    #allocation7 [shape = 'u8[8192]{0}', space=vmem, size = 0x2000, scoped, tag = 'output window, operand 0']
    #allocation8 [shape = 'u8[8192]{0}', space=vmem, size = 0x2000, scoped, tag = 'output window, operand 1']
    #allocation9 [shape = 's32[2]{0}', space=sflag, size = 0x8, scoped, tag = 'scoped memory for tpu_custom_call.1']
    %9 = vsyncpa [#allocation3], 0
    %s10 = scalar_lea.sflag [#allocation3], 1
    %11 = vsyncpa %s10, 0
    %12 = vsyncpa [#allocation6], 0
    %s13 = scalar_lea.sflag [#allocation6], 1
    %14 = vsyncpa %s13, 0
    %15 = vsyncpa [#allocation4], 0
    %s16 = scalar_lea.sflag [#allocation4], 1
    %17 = vsyncpa %s16, 0
    %18 = vsyncpa [#allocation9], 0
    %s19 = scalar_lea.sflag [#allocation9], 1
    %20 = vsyncpa %s19, 0
    loop: start=0, step=1, limit=4
    $region2: #{tpu_custom_call.1} parent=1 // loop_pre_header
      _
    $region3: #{tpu_custom_call.1} parent=1 // loop_header
      %s22 = sphi 0, %s26
      %p23 = scmp.ge.s32.totalorder %s22, 4
      %s29 = sphi 0, %s48
      %s30 = sphi 0, %s44
      %s31 = sphi 0, %s40
      %s32 = sphi 0, %s29
      %s33 = sphi 0, %s30
      %s34 = sphi 0, %s31
      %s35 = sphi 0, %s32
      %s36 = sphi 0, %s33
      %s37 = sphi 0, %s34
      %s55 = sphi 0, %s57
      %s58 = sphi 0, %s55
      %s59 = sphi 0, %s58
      %s75 = sphi 0, %s59
      %s83 = sphi 0, %s85
      %s86 = sphi 0, %s83
      %s87 = sphi 0, %s86
      %s103 = sphi 0, %s87
      %s111 = sphi 0, %s113
      %s114 = sphi 0, %s111
      %s115 = sphi 0, %s114
      %s131 = sphi 0, %s115
      %s139 = sphi 0, %s141
      %s142 = sphi 0, %s139
      %s143 = sphi 0, %s142
      %s159 = sphi 0, %s143
    $region4: #{tpu_custom_call.1} parent=1 // loop_header_branch
      %25 = sbr.rel (%p23) target = $region8
    $region5: #{tpu_custom_call.1} parent=1 // loop_body
      %s27 = ssub.s32 %s22, 1
      %s28 = ssub.s32 %s22, 2
      %s38 = sadd.s32 1, %s31
      %p39 = scmp.ge.s32.totalorder %s38, 1
      %s40 = scalar_select %p39, 0, %s38
      %s41 = sadd.s32 1, %s30
      %s42 = scalar_select %p39, %s41, %s30
      %p43 = scmp.ge.s32.totalorder %s42, 1
      %s44 = scalar_select %p43, 0, %s42
      %s45 = sadd.s32 1, %s29
      %s46 = scalar_select %p43, %s45, %s29
      %p47 = scmp.ge.s32.totalorder %s46, 2
      %s48 = scalar_select %p47, 0, %s46
      %s49 = sadd.s32 %s29, %s31
      %s50 = sadd.s32 %s48, %s40
      %s51 = ssub.s32 %s30, %s44
      %s52 = ssub.s32 %s49, %s50
      %s53 = sor.u32 %s51, %s52
      %p54 = scmp.eq.s32.totalorder %s53, 0
      %s56 = sadd.s32 %s55, 1
      %s57 = scalar_select %p54, %s55, %s56
      %p60 = pneg %p54
      %p61 = scmp.eq.s32.totalorder %s22, 1
      %p62 = por %p60, %p61
      %p63 = scmp.ne.s32.totalorder %s55, %s58
      %p64 = scmp.eq.s32.totalorder %s22, 0
      %p65 = por %p63, %p64
      %p66 = scmp.ne.s32.totalorder %s55, %s58
      %p67 = scmp.eq.s32.totalorder %s27, 1
      %p68 = por %p66, %p67
      %p69 = scmp.ne.s32.totalorder %s58, %s59
      %p70 = scmp.eq.s32.totalorder %s27, 0
      %p71 = por %p69, %p70
      %p72 = scmp.ne.s32.totalorder %s58, %s59
      %p73 = scmp.eq.s32.totalorder %s28, 1
      %p74 = por %p72, %p73
      %p76 = scmp.ne.s32.totalorder %s59, %s75
      %p77 = scmp.eq.s32.totalorder %s28, 0
      %p78 = por %p76, %p77
      %s79 = sadd.s32 %s29, %s31
      %s80 = sadd.s32 %s48, %s40
      %s81 = ssub.s32 %s79, %s80
      %p82 = scmp.eq.s32.totalorder %s81, 0
      %s84 = sadd.s32 %s83, 1
      %s85 = scalar_select %p82, %s83, %s84
      %p88 = pneg %p82
      %p89 = scmp.eq.s32.totalorder %s22, 1
      %p90 = por %p88, %p89
      %p91 = scmp.ne.s32.totalorder %s83, %s86
      %p92 = scmp.eq.s32.totalorder %s22, 0
      %p93 = por %p91, %p92
      %p94 = scmp.ne.s32.totalorder %s83, %s86
      %p95 = scmp.eq.s32.totalorder %s27, 1
      %p96 = por %p94, %p95
      %p97 = scmp.ne.s32.totalorder %s86, %s87
      %p98 = scmp.eq.s32.totalorder %s27, 0
      %p99 = por %p97, %p98
      %p100 = scmp.ne.s32.totalorder %s86, %s87
      %p101 = scmp.eq.s32.totalorder %s28, 1
      %p102 = por %p100, %p101
      %p104 = scmp.ne.s32.totalorder %s87, %s103
      %p105 = scmp.eq.s32.totalorder %s28, 0
      %p106 = por %p104, %p105
      %s107 = ssub.s32 %s29, %s48
      %s108 = ssub.s32 %s30, %s44
      %s109 = sor.u32 %s107, %s108
      %p110 = scmp.eq.s32.totalorder %s109, 0
      %s112 = sadd.s32 %s111, 1
      %s113 = scalar_select %p110, %s111, %s112
      %p116 = pneg %p110
      %p117 = scmp.eq.s32.totalorder %s22, 1
      %p118 = por %p116, %p117
      %p119 = scmp.ne.s32.totalorder %s111, %s114
      %p120 = scmp.eq.s32.totalorder %s22, 0
      %p121 = por %p119, %p120
      %p122 = scmp.ne.s32.totalorder %s111, %s114
      %p123 = scmp.eq.s32.totalorder %s27, 1
      %p124 = por %p122, %p123
      %p125 = scmp.ne.s32.totalorder %s114, %s115
      %p126 = scmp.eq.s32.totalorder %s27, 0
      %p127 = por %p125, %p126
      %p128 = scmp.ne.s32.totalorder %s114, %s115
      %p129 = scmp.eq.s32.totalorder %s28, 1
      %p130 = por %p128, %p129
      %p132 = scmp.ne.s32.totalorder %s115, %s131
      %p133 = scmp.eq.s32.totalorder %s28, 0
      %p134 = por %p132, %p133
      %s135 = ssub.s32 %s29, %s48
      %s136 = ssub.s32 %s30, %s44
      %s137 = sor.u32 %s135, %s136
      %p138 = scmp.eq.s32.totalorder %s137, 0
      %s140 = sadd.s32 %s139, 1
      %s141 = scalar_select %p138, %s139, %s140
      %p144 = pneg %p138
      %p145 = scmp.eq.s32.totalorder %s22, 1
      %p146 = por %p144, %p145
      %p147 = scmp.ne.s32.totalorder %s139, %s142
      %p148 = scmp.eq.s32.totalorder %s22, 0
      %p149 = por %p147, %p148
      %p150 = scmp.ne.s32.totalorder %s139, %s142
      %p151 = scmp.eq.s32.totalorder %s27, 1
      %p152 = por %p150, %p151
      %p153 = scmp.ne.s32.totalorder %s142, %s143
      %p154 = scmp.eq.s32.totalorder %s27, 0
      %p155 = por %p153, %p154
      %p156 = scmp.ne.s32.totalorder %s142, %s143
      %p157 = scmp.eq.s32.totalorder %s28, 1
      %p158 = por %p156, %p157
      %p160 = scmp.ne.s32.totalorder %s143, %s159
      %p161 = scmp.eq.s32.totalorder %s28, 0
      %p162 = por %p160, %p161
      %p163 = scmp.le.s32.totalorder 1, %s22
      %p164 = scmp.lt.s32.totalorder %s22, 3
      %p165 = pnand %p163, %p164
      %p166 = pneg %p165
      // Predicated region
      $region9: #{tpu_custom_call.1} parent=5 // pred_check
        _
      $region10: #{tpu_custom_call.1} parent=5 // pred_check_branch
        %168 = sbr.rel (%p165) target = $region12
      $region11: #{tpu_custom_call.1} parent=5 // pred_region
        %s169 = ssub.s32 %s22, 1
      $region12: #{tpu_custom_call.1} parent=5 // pred_fallthru
        _
      %p170 = scmp.lt.s32.totalorder %s22, 2
      // Predicated region
      $region13: #{tpu_custom_call.1} parent=5 // pred_check
        %p171 = pneg %p170
      $region14: #{tpu_custom_call.1} parent=5 // pred_check_branch
        %173 = sbr.rel (%p171) target = $region16
      $region15: #{tpu_custom_call.1} parent=5 // pred_region
        // Predicated region
        $region17: #{tpu_custom_call.1} parent=15 // pred_check
          %p174 = pneg %p65
        $region18: #{tpu_custom_call.1} parent=15 // pred_check_branch
          %176 = sbr.rel (%p174) target = $region20
        $region19: #{tpu_custom_call.1} parent=15 // pred_region
          %s177 = sand.u32 %s55, 1
          %s178 = scalar_lea.sflag [#allocation3], %s177
          %s179 = sand.u32 %s55, 1
          %s180 = smul.addr %s179, 4
          %s181 = scalar_lea.vmem [#allocation2], %s180
          %s182 = sadd.s32 %s29, %s31
          %s184 = ssub.s32 64, 64
          %185 = vsyncadd %s178, %s184
          %s186 = smul.addr %s30, 2
          %s187 = sadd.s32 %s182, %s186
          %s188 = smul.addr %s187, 64
          %s189 = scalar_lea.hbm %s0, %s188
          %s191 = sshll.u32 %s181, 4
          %s192 = int_to_ptr.vmem [resolvable:$true] %s191
          %194 = dma.hbm_to_vmem [thread:$0]  %s189, 64, %s192, %s178
        $region20: #{tpu_custom_call.1} parent=15 // pred_fallthru
          _
        // Predicated region
        $region21: #{tpu_custom_call.1} parent=15 // pred_check
          %p195 = pneg %p93
        $region22: #{tpu_custom_call.1} parent=15 // pred_check_branch
          %197 = sbr.rel (%p195) target = $region24
        $region23: #{tpu_custom_call.1} parent=15 // pred_region
          %s198 = sand.u32 %s83, 1
          %s199 = scalar_lea.sflag [#allocation6], %s198
          %s200 = sand.u32 %s83, 1
          %s201 = smul.addr %s200, 64
          %s202 = scalar_lea.vmem [#allocation5], %s201
          %s203 = sadd.s32 %s29, %s31
          %s204 = smul.u32 16, %s203
          %s206 = ssub.s32 1024, 1024
          %207 = vsyncadd %s199, %s206
          %s208 = smul.addr %s204, 64
          %s209 = scalar_lea.hbm %s1, %s208
          %s210 = sshll.u32 %s202, 4
          %s211 = int_to_ptr.vmem [resolvable:$true] %s210
          %216 = dma.hbm_to_vmem [thread:$0]  %s209, 1024, %s211, %s199, 64, 64, 4
        $region24: #{tpu_custom_call.1} parent=15 // pred_fallthru
          _
      $region16: #{tpu_custom_call.1} parent=5 // pred_fallthru
        _
      %p217 = scmp.le.s32.totalorder 1, %s22
      %p218 = scmp.lt.s32.totalorder %s22, 3
      %p219 = pnand %p217, %p218
      %p220 = pneg %p219
      // Predicated region
      $region25: #{tpu_custom_call.1} parent=5 // pred_check
        _
      $region26: #{tpu_custom_call.1} parent=5 // pred_check_branch
        %222 = sbr.rel (%p219) target = $region28
      $region27: #{tpu_custom_call.1} parent=5 // pred_region
        %s223 = ssub.s32 %s22, 1
        %s224 = sand.u32 %s58, 1
        %s225 = scalar_lea.sflag [#allocation3], %s224
        %s226 = sand.u32 %s58, 1
        %s227 = smul.addr %s226, 4
        %s228 = scalar_lea.vmem [#allocation2], %s227
        // Predicated region
        $region29: #{tpu_custom_call.1} parent=27 // pred_check
          %p229 = pneg %p71
        $region30: #{tpu_custom_call.1} parent=27 // pred_check_branch
          %231 = sbr.rel (%p229) target = $region32
        $region31: #{tpu_custom_call.1} parent=27 // pred_region
          %232 = dma.done %s225, 64
        $region32: #{tpu_custom_call.1} parent=27 // pred_fallthru
          _
        %s233 = sand.u32 %s86, 1
        %s234 = scalar_lea.sflag [#allocation6], %s233
        %s235 = sand.u32 %s86, 1
        %s236 = smul.addr %s235, 64
        %s237 = scalar_lea.vmem [#allocation5], %s236
        // Predicated region
        $region33: #{tpu_custom_call.1} parent=27 // pred_check
          %p238 = pneg %p99
        $region34: #{tpu_custom_call.1} parent=27 // pred_check_branch
          %240 = sbr.rel (%p238) target = $region36
        $region35: #{tpu_custom_call.1} parent=27 // pred_region
          %241 = dma.done %s234, 1024
        $region36: #{tpu_custom_call.1} parent=27 // pred_fallthru
          _
        %s242 = sand.u32 %s58, 1
        %s243 = scalar_lea.sflag [#allocation3], %s242
        %s244 = sand.u32 %s58, 1
        %s245 = smul.addr %s244, 4
        %s246 = scalar_lea.vmem [#allocation2], %s245
        %p247 = pneg %p71
        %p248 = pneg %p68
        %s249 = sand.u32 %s86, 1
        %s250 = scalar_lea.sflag [#allocation6], %s249
        %s251 = sand.u32 %s86, 1
        %s252 = smul.addr %s251, 64
        %s253 = scalar_lea.vmem [#allocation5], %s252
        %p254 = pneg %p99
        %p255 = pneg %p96
        %p256 = pneg %p127
        %p257 = pneg %p124
        %s258 = sand.u32 %s114, 1
        %s259 = scalar_lea.sflag [#allocation4], %s258
        %s260 = sand.u32 %s114, 1
        %s261 = smul.addr %s260, 8
        %s262 = scalar_lea.vmem [#allocation7], %s261
        %p263 = pneg %p155
        %p264 = pneg %p152
        %s265 = sand.u32 %s142, 1
        %s266 = scalar_lea.sflag [#allocation9], %s265
        %s267 = sand.u32 %s142, 1
        %s268 = smul.addr %s267, 8
        %s269 = scalar_lea.vmem [#allocation8], %s268
        %s270 = sadd.s32 %s32, %s34
        %s271 = sadd.s32 %s32, %s34
        %s272 = smul.u32 16, %s271
        %p274 = scmp.eq.s32.totalorder %s34, 0
        // Predicated region
        $region37: #{tpu_custom_call.1} parent=27 // pred_check
          %p275 = pneg %p274
        $region38: #{tpu_custom_call.1} parent=27 // pred_check_branch
          %277 = sbr.rel (%p275) target = $region40
        $region39: #{tpu_custom_call.1} parent=27 // pred_region
          %278 = vst [vmem:[%s262] sm:$0xff] 0.0
          %279 = vst [vmem:[%s269] sm:$0xff] 0.0
        $region40: #{tpu_custom_call.1} parent=27 // pred_fallthru
          _
        %v280 = vld [vmem:[%s228] sm:$0xf]
        %v281 = vld [vmem:[%s262] sm:$0xff]
        %v282 = vld [vmem:[%s237] sm:$0xf]
        %v283 = vld [vmem:[%s237 + $0x4] sm:$0xf]
        %v284 = vld [vmem:[%s237 + $0x8] sm:$0xf]
        %v285 = vld [vmem:[%s237 + $0xc] sm:$0xf]
        %v286 = vld [vmem:[%s237 + $0x10] sm:$0xf]
        %v287 = vld [vmem:[%s237 + $0x14] sm:$0xf]
        %v288 = vld [vmem:[%s237 + $0x18] sm:$0xf]
        %v289 = vld [vmem:[%s237 + $0x1c] sm:$0xf]
        %v290 = vld [vmem:[%s237 + $0x20] sm:$0xf]
        %v291 = vld [vmem:[%s237 + $0x24] sm:$0xf]
        %v292 = vld [vmem:[%s237 + $0x28] sm:$0xf]
        %v293 = vld [vmem:[%s237 + $0x2c] sm:$0xf]
        %v294 = vld [vmem:[%s237 + $0x30] sm:$0xf]
        %v295 = vld [vmem:[%s237 + $0x34] sm:$0xf]
        %v296 = vld [vmem:[%s237 + $0x38] sm:$0xf]
        %v297 = vld [vmem:[%s237 + $0x3c] sm:$0xf]
        %v314 = vunpack.c.l.b16 %v282
        %v315 = vunpack.c.l.b16 %v283
        %v316 = vunpack.c.l.b16 %v284
        %v317 = vunpack.c.l.b16 %v285
        %v318 = vunpack.c.l.b16 %v286
        %v319 = vunpack.c.l.b16 %v287
        %v320 = vunpack.c.l.b16 %v288
        %v321 = vunpack.c.l.b16 %v289
        %v322 = vunpack.c.l.b16 %v290
        %v323 = vunpack.c.l.b16 %v291
        %v324 = vunpack.c.l.b16 %v292
        %v325 = vunpack.c.l.b16 %v293
        %v326 = vunpack.c.l.b16 %v294
        %v327 = vunpack.c.l.b16 %v295
        %v328 = vunpack.c.l.b16 %v296
        %v329 = vunpack.c.l.b16 %v297
        %v330 = vpack.c.b16 %v315, %v314
        %v331 = vpack.c.b16 %v317, %v316
        %v332 = vpack.c.b16 %v319, %v318
        %v333 = vpack.c.b16 %v321, %v320
        %v334 = vpack.c.b16 %v323, %v322
        %v335 = vpack.c.b16 %v325, %v324
        %v336 = vpack.c.b16 %v327, %v326
        %v337 = vpack.c.b16 %v329, %v328
        %346 = vmatprep.subr.bf16.mxu0 0
        %347 = vmatpush1.bf16.msra.mxu0 %v330
        %348 = vmatprep.subr.bf16.mxu0 0
        %349 = vmatpush1.bf16.msra.mxu0 %v331
        %350 = vmatprep.subr.bf16.mxu0 0
        %351 = vmatpush1.bf16.msra.mxu0 %v332
        %352 = vmatprep.subr.bf16.mxu0 0
        %353 = vmatpush1.bf16.msra.mxu0 %v333
        %354 = vmatprep.subr.bf16.mxu0 0
        %355 = vmatpush1.bf16.msra.mxu0 %v334
        %356 = vmatprep.subr.bf16.mxu0 0
        %357 = vmatpush1.bf16.msra.mxu0 %v335
        %358 = vmatprep.subr.bf16.mxu0 0
        %359 = vmatpush1.bf16.msra.mxu0 %v336
        %360 = vmatprep.subr.bf16.mxu0 0
        %361 = vmatpush1.bf16.msra.mxu0 %v337
        %362 = vmatprep.subr.bf16.mxu0 0
        %363 = vmatpush1.bf16.msra.mxu0 0
        %364 = vmatprep.subr.bf16.mxu0 0
        %365 = vmatpush1.bf16.msra.mxu0 0
        %366 = vmatprep.subr.bf16.mxu0 0
        %367 = vmatpush1.bf16.msra.mxu0 0
        %368 = vmatprep.subr.bf16.mxu0 0
        %369 = vmatpush1.bf16.msra.mxu0 0
        %370 = vmatprep.subr.bf16.mxu0 0
        %371 = vmatpush1.bf16.msra.mxu0 0
        %372 = vmatprep.subr.bf16.mxu0 0
        %373 = vmatpush1.bf16.msra.mxu0 0
        %374 = vmatprep.subr.bf16.mxu0 0
        %375 = vmatpush1.bf16.msra.mxu0 0
        %376 = vmatprep.subr.bf16.mxu0 0
        %377 = vmatpush1.bf16.msra.mxu0 0
        %378 = vmatprep.mubr.bf16.mxu0 0
        %379 = vmatmul.mubr.bf16.gmra.mrb[0].mxu0 %v280
        %v380 = vpop.f32.mrb[0].mxu0
        %v381 = vadd.f32 0.0, %v380
        %v382 = vpop.f32.mrb[0].mxu0
        %v383 = vpop.f32.mrb[0].mxu0
        %v384 = vpop.f32.mrb[0].mxu0
        %385 = vdwg.mxu0
        %v386 = vadd.f32 %v281, %v381
        %387 = vst [vmem:[%s262] sm:$0xff] %v386
        %v388 = vld [vmem:[%s269] sm:$0xff]
        %v389 = vunpack.c.l.bf16 %v280
        %390 = vadd.xlane.f32.xlu0 %v389
        %v391 = vpop.xlane.xlu0 %390
        %v392 = vadd.f32 %v388, %v391
        %393 = vst [vmem:[%s269] sm:$0xff] %v392
        %s394 = sand.u32 %s114, 1
        %s395 = scalar_lea.sflag [#allocation4], %s394
        %s396 = sand.u32 %s114, 1
        %s397 = smul.addr %s396, 8
        %s398 = scalar_lea.vmem [#allocation7], %s397
        %s399 = sand.u32 %s142, 1
        %s400 = scalar_lea.sflag [#allocation9], %s399
        %s401 = sand.u32 %s142, 1
        %s402 = smul.addr %s401, 8
        %s403 = scalar_lea.vmem [#allocation8], %s402
        // Predicated region
        $region41: #{tpu_custom_call.1} parent=27 // pred_check
          %p404 = pneg %p124
        $region42: #{tpu_custom_call.1} parent=27 // pred_check_branch
          %406 = sbr.rel (%p404) target = $region44
        $region43: #{tpu_custom_call.1} parent=27 // pred_region
          %s408 = ssub.s32 128, 128
          %409 = vsyncadd %s395, %s408
          %s410 = sadd.s32 %s33, %s32
          %s411 = smul.addr %s410, 128
          %s412 = scalar_lea.hbm %s2, %s411
          %s414 = sshll.u32 %s398, 4
          %s415 = int_to_ptr.vmem [resolvable:$true] %s414
          %417 = dma.vmem_to_hbm [thread:$0]  %s415, 128, %s412, %s395
        $region44: #{tpu_custom_call.1} parent=27 // pred_fallthru
          _
        // Predicated region
        $region45: #{tpu_custom_call.1} parent=27 // pred_check
          %p418 = pneg %p152
        $region46: #{tpu_custom_call.1} parent=27 // pred_check_branch
          %420 = sbr.rel (%p418) target = $region48
        $region47: #{tpu_custom_call.1} parent=27 // pred_region
          %s422 = ssub.s32 128, 128
          %423 = vsyncadd %s400, %s422
          %s424 = sadd.s32 %s33, %s32
          %s425 = smul.addr %s424, 128
          %s426 = scalar_lea.hbm %s3, %s425
          %s428 = sshll.u32 %s403, 4
          %s429 = int_to_ptr.vmem [resolvable:$true] %s428
          %431 = dma.vmem_to_hbm [thread:$0]  %s429, 128, %s426, %s400
        $region48: #{tpu_custom_call.1} parent=27 // pred_fallthru
          _
      $region28: #{tpu_custom_call.1} parent=5 // pred_fallthru
        _
      %p432 = scmp.le.s32.totalorder 2, %s22
      // Predicated region
      $region49: #{tpu_custom_call.1} parent=5 // pred_check
        %p433 = pneg %p432
      $region50: #{tpu_custom_call.1} parent=5 // pred_check_branch
        %435 = sbr.rel (%p433) target = $region52
      $region51: #{tpu_custom_call.1} parent=5 // pred_region
        %s436 = ssub.s32 %s22, 2
        // Predicated region
        $region53: #{tpu_custom_call.1} parent=51 // pred_check
          %p437 = pneg %p130
        $region54: #{tpu_custom_call.1} parent=51 // pred_check_branch
          %439 = sbr.rel (%p437) target = $region56
        $region55: #{tpu_custom_call.1} parent=51 // pred_region
          %s440 = sand.u32 %s115, 1
          %s441 = scalar_lea.sflag [#allocation4], %s440
          %s442 = sand.u32 %s115, 1
          %s443 = smul.addr %s442, 8
          %s444 = scalar_lea.vmem [#allocation7], %s443
          %445 = dma.done %s441, 128
        $region56: #{tpu_custom_call.1} parent=51 // pred_fallthru
          _
        // Predicated region
        $region57: #{tpu_custom_call.1} parent=51 // pred_check
          %p446 = pneg %p158
        $region58: #{tpu_custom_call.1} parent=51 // pred_check_branch
          %448 = sbr.rel (%p446) target = $region60
        $region59: #{tpu_custom_call.1} parent=51 // pred_region
          %s449 = sand.u32 %s143, 1
          %s450 = scalar_lea.sflag [#allocation9], %s449
          %s451 = sand.u32 %s143, 1
          %s452 = smul.addr %s451, 8
          %s453 = scalar_lea.vmem [#allocation8], %s452
          %454 = dma.done %s450, 128
        $region60: #{tpu_custom_call.1} parent=51 // pred_fallthru
          _
      $region52: #{tpu_custom_call.1} parent=5 // pred_fallthru
        _
    $region6: #{tpu_custom_call.1} parent=1 // loop_footer
      %s26 = sadd.s32 1, %s22
    $region7: #{tpu_custom_call.1} parent=1 // loop_footer_branch
      %21 = sbr.rel target = $region3
    $region8: #{tpu_custom_call.1} parent=1 // loop_exit
      _
    %455 = vsyncpa [#allocation3], 1
    %s456 = scalar_lea.sflag [#allocation3], 1
    %457 = vsyncpa %s456, 1
    %458 = vsyncpa [#allocation6], 1
    %s459 = scalar_lea.sflag [#allocation6], 1
    %460 = vsyncpa %s459, 1
    %461 = vsyncpa [#allocation4], 1
    %s462 = scalar_lea.sflag [#allocation4], 1
    %463 = vsyncpa %s462, 1
    %464 = vsyncpa [#allocation9], 1
    %s465 = scalar_lea.sflag [#allocation9], 1
    %466 = vsyncpa %s465, 1

</llo_original>
